<compile_context>
chip_gen: v5e
topology: v5e:2x2
jax: 0.10.0
libtpu: 0.0.40
codegen_flags: <defaults>
</compile_context>

<pallas_src>
import functools
import math

import jax
import jax.numpy as jnp
from jax import lax
from jax.experimental import pallas as pl
from jax.experimental.pallas import tpu as pltpu

_MIX1 = 0x9E3779B1  # golden-ratio odd constant (seed mix)
_MIX2 = 0x7FEB352D  # prospector / murmur-style finalizer constants
_MIX3 = 0x846CA68B


def _dropout_kernel(seed_ref, x_ref, o_ref, *, thr, scale, per_column, ncols):
    tr, tc = x_ref.shape
    seed = seed_ref[0].astype(jnp.uint32) * jnp.uint32(_MIX1)

    # Global column index of every element of this block.
    col = lax.broadcasted_iota(jnp.int32, (1, tc) if per_column else (tr, tc), 1)
    col_g = (pl.program_id(1) * tc + col).astype(jnp.uint32)
    if per_column:
        # broadcast_dim case: mask depends only on the column (shared across rows).
        key = col_g                                   # shape (1, tc)
    else:
        row = lax.broadcasted_iota(jnp.int32, (tr, tc), 0)
        row_g = (pl.program_id(0) * tr + row).astype(jnp.uint32)
        key = row_g * jnp.uint32(ncols) + col_g       # global flat element id

    # splitmix32-style finalizer: one uniform u32 per (seed, key).
    h = key ^ seed
    h = (h ^ (h >> 16)) * jnp.uint32(_MIX2)
    h = (h ^ (h >> 15)) * jnp.uint32(_MIX3)
    h = h ^ (h >> 16)

    keep = h < jnp.uint32(thr)                        # Bernoulli(keep_prob)
    x = x_ref[...]
    scaled = x * jnp.asarray(scale, dtype=x.dtype)
    o_ref[...] = jnp.where(keep, scaled, jnp.zeros((), dtype=x.dtype))


def _choose_tile_rows(rows, tile_c, itemsize):
    # Target ~2 MiB per block (x + out double-buffered stays well inside the
    # default scoped-VMEM limit on v5e/v6e and v7x's smaller 64 MiB VMEM).
    target = max(8, (2 * 1024 * 1024) // max(1, tile_c * itemsize))
    if target >= rows:
        return rows                                   # full dim: always legal
    tr = max(8, (target // 8) * 8)                    # (8, 128) tiling rule
    return min(tr, rows)


def pallas_dropout(x, seed, *, p_drop=0.15, broadcast_dim=None, training=True):
    """Forward pass of Dropout. In eval mode (training=False) it is identity."""
    if not training or p_drop <= 0.0 or x.size == 0:
        return x
    if p_drop >= 1.0:
        return jnp.zeros_like(x)

    keep_prob = 1.0 - float(p_drop)
    # keep iff uniform_u32 < keep_prob * 2^32 ; clamp so it never wraps to 0.
    thr = min(int(round(keep_prob * 2.0 ** 32)), 2 ** 32 - 1)
    scale = 1.0 / keep_prob
    orig_shape = x.shape

    if broadcast_dim is None:
        flat = x.reshape(-1)
        n = flat.shape[0]
        lane = next((c for c in (1024, 512, 256, 128) if n % c == 0), 128)
        pad = (-n) % lane
        if pad:
            flat = jnp.pad(flat, (0, pad))
        x2 = flat.reshape(-1, lane)
        per_column = False
    else:
        b = broadcast_dim % x.ndim
        xt = jnp.moveaxis(x, b, 0)                    # broadcast axis -> rows
        t_shape = xt.shape
        m = math.prod(t_shape[1:])
        x2 = xt.reshape(t_shape[0], m)
        pad = (-m) % 128
        if pad:
            x2 = jnp.pad(x2, ((0, 0), (0, pad)))
        per_column = True

    rows, cols = x2.shape
    tile_c = cols if cols <= 1024 else 1024           # multiple of 128 or full
    tile_r = _choose_tile_rows(rows, tile_c, x2.dtype.itemsize)

    kernel = functools.partial(
        _dropout_kernel, thr=thr, scale=scale, per_column=per_column, ncols=cols)
    seed_arr = jnp.asarray([seed], dtype=jnp.int32)

    out2 = pl.pallas_call(
        kernel,
        out_shape=jax.ShapeDtypeStruct((rows, cols), x2.dtype),
        grid=(pl.cdiv(rows, tile_r), pl.cdiv(cols, tile_c)),
        in_specs=[
            pl.BlockSpec(memory_space=pltpu.MemorySpace.SMEM),      # seed scalar
            pl.BlockSpec((tile_r, tile_c), lambda i, j: (i, j)),    # x tile
        ],
        out_specs=pl.BlockSpec((tile_r, tile_c), lambda i, j: (i, j)),
        compiler_params=pltpu.CompilerParams(
            dimension_semantics=("parallel", "parallel")),          # megacore on v7x
    )(seed_arr, x2)

    if broadcast_dim is None:
        out = out2.reshape(-1)[: math.prod(orig_shape)].reshape(orig_shape)
    else:
        b = broadcast_dim % x.ndim
        out = jnp.moveaxis(out2[:, :m].reshape(t_shape), 0, b)
    return out


if __name__ == "__main__":
    key = jax.random.PRNGKey(0)
    # Small NCHW input, consistent with typical usage of this module.
    x = jax.random.normal(key, (2, 4, 16, 16), dtype=jnp.float32)
    p_drop = 0.15
    scale = 1.0 / (1.0 - p_drop)

    # Case 1: plain dropout (broadcast_dim=None, the module default).
    y = pallas_dropout(x, seed=1234, p_drop=p_drop, broadcast_dim=None)
    y = jax.block_until_ready(y)
    # Every output element must be either 0 (dropped) or x * scale (kept).
    is_zero = jnp.abs(y) < 1e-6
    is_kept = jnp.abs(y - x * scale) < 1e-4
    assert bool(jnp.all(is_zero | is_kept)), "dropout output values inconsistent"
    # Mask must not be degenerate: keep fraction should be near 1 - p_drop.
    frac_kept = float(jnp.mean(is_kept.astype(jnp.float32)))
    assert 0.6 < frac_kept < 0.98, f"keep fraction {frac_kept} far from 0.85"

    # Case 2: broadcast_dim=1 — mask shared across the channel dimension.
    yb = pallas_dropout(x, seed=5678, p_drop=p_drop, broadcast_dim=1)
    yb = jax.block_until_ready(yb)
    mask_b = jnp.where(jnp.abs(x) > 1e-6, yb / (x * scale), 1.0)
    assert bool(
        jnp.all(jnp.abs(mask_b - mask_b[:, :1]) < 1e-4)
    ), "broadcast mask not shared along broadcast_dim"

    # Case 3: eval mode is identity.
    ye = pallas_dropout(x, seed=1, p_drop=p_drop, training=False)
    assert bool(jnp.all(ye == x))

    print("KERNEL_OK")
</pallas_src>

<mosaic_0001>
module attributes {stable_mosaic.version = 11 : i64} {
  func.func @_dropout_kernel(%arg0: i32, %arg1: i32, %arg2: memref<1xi32, #tpu.memory_space<smem>>, %arg3: memref<2x1024xf32, #tpu.memory_space<vmem>>, %arg4: memref<2x1024xf32, #tpu.memory_space<vmem>>) attributes {dimension_semantics = [#tpu.dimension_semantics<parallel>, #tpu.dimension_semantics<parallel>], iteration_bounds = array<i64: 1, 1>, scalar_prefetch = 0 : i64, scratch_operands = 0 : i64, tpu.core_type = #tpu.core_type<tc>, window_params = [{transform_indices = @transform_0, window_bounds = array<i64: 1>}, {transform_indices = @transform_1, window_bounds = array<i64: 2, 1024>}, {transform_indices = @transform_2, window_bounds = array<i64: 2, 1024>}]} {
    %c0 = arith.constant 0 : index
    %0 = memref.load %arg2[%c0] : memref<1xi32, #tpu.memory_space<smem>>
    %c-1640531535_i32 = arith.constant -1640531535 : i32
    %1 = arith.muli %0, %c-1640531535_i32 : i32
    %2 = tpu.iota {dimensions = array<i32: 1>} : vector<2x1024xi32>
    %c1024_i32 = arith.constant 1024 : i32
    %3 = arith.muli %arg1, %c1024_i32 : i32
    %4 = vector.broadcast %3 : i32 to vector<2x1024xi32>
    %5 = arith.addi %4, %2 : vector<2x1024xi32>
    %6 = tpu.iota {dimensions = array<i32: 0>} : vector<2x1024xi32>
    %c2_i32 = arith.constant 2 : i32
    %7 = arith.muli %arg0, %c2_i32 : i32
    %8 = vector.broadcast %7 : i32 to vector<2x1024xi32>
    %9 = arith.addi %8, %6 : vector<2x1024xi32>
    %c1024_i32_0 = arith.constant 1024 : i32
    %10 = vector.broadcast %c1024_i32_0 : i32 to vector<2x1024xi32>
    %11 = arith.muli %9, %10 : vector<2x1024xi32>
    %12 = arith.addi %11, %5 : vector<2x1024xi32>
    %13 = vector.broadcast %1 : i32 to vector<2x1024xi32>
    %14 = arith.xori %12, %13 : vector<2x1024xi32>
    %c16_i32 = arith.constant 16 : i32
    %15 = vector.broadcast %c16_i32 : i32 to vector<2x1024xi32>
    %16 = arith.shrui %14, %15 : vector<2x1024xi32>
    %17 = arith.xori %14, %16 : vector<2x1024xi32>
    %c2146121005_i32 = arith.constant 2146121005 : i32
    %18 = vector.broadcast %c2146121005_i32 : i32 to vector<2x1024xi32>
    %19 = arith.muli %17, %18 : vector<2x1024xi32>
    %c15_i32 = arith.constant 15 : i32
    %20 = vector.broadcast %c15_i32 : i32 to vector<2x1024xi32>
    %21 = arith.shrui %19, %20 : vector<2x1024xi32>
    %22 = arith.xori %19, %21 : vector<2x1024xi32>
    %c-2073254261_i32 = arith.constant -2073254261 : i32
    %23 = vector.broadcast %c-2073254261_i32 : i32 to vector<2x1024xi32>
    %24 = arith.muli %22, %23 : vector<2x1024xi32>
    %c16_i32_1 = arith.constant 16 : i32
    %25 = vector.broadcast %c16_i32_1 : i32 to vector<2x1024xi32>
    %26 = arith.shrui %24, %25 : vector<2x1024xi32>
    %27 = arith.xori %24, %26 : vector<2x1024xi32>
    %c-644245094_i32 = arith.constant -644245094 : i32
    %28 = vector.broadcast %c-644245094_i32 : i32 to vector<2x1024xi32>
    %29 = arith.cmpi ult, %27, %28 : vector<2x1024xi32>
    %c0_2 = arith.constant 0 : index
    %c0_3 = arith.constant 0 : index
    %30 = vector.load %arg3[%c0_2, %c0_3] : memref<2x1024xf32, #tpu.memory_space<vmem>>, vector<2x1024xf32>
    %cst = arith.constant 1.17647064 : f32
    %31 = vector.broadcast %cst : f32 to vector<2x1024xf32>
    %32 = arith.mulf %30, %31 : vector<2x1024xf32>
    %cst_4 = arith.constant 0.000000e+00 : f32
    %33 = vector.broadcast %cst_4 : f32 to vector<2x1024xf32>
    %34 = arith.select %29, %32, %33 : vector<2x1024xi1>, vector<2x1024xf32>
    %c0_5 = arith.constant 0 : index
    %c0_6 = arith.constant 0 : index
    %35 = vector.load %arg4[%c0_5, %c0_6] : memref<2x1024xf32, #tpu.memory_space<vmem>>, vector<2x1024xf32>
    tpu.vector_store %arg4[%c0_5, %c0_6], %34 {strides = array<i32>} : memref<2x1024xf32, #tpu.memory_space<vmem>>, vector<2x1024xf32>,
    return
  }
  func.func @transform_0(%arg0: i32, %arg1: i32) -> i32 {
    %c0_i32 = arith.constant 0 : i32
    %c0_i32_0 = arith.constant 0 : i32
    return %c0_i32 : i32
  }
  func.func @transform_1(%arg0: i32, %arg1: i32) -> (i32, i32) {
    %c0_i32 = arith.constant 0 : i32
    return %arg0, %arg1 : i32, i32
  }
  func.func @transform_2(%arg0: i32, %arg1: i32) -> (i32, i32) {
    %c0_i32 = arith.constant 0 : i32
    return %arg0, %arg1 : i32, i32
  }
}

</mosaic_0001>

<llo_original>
// kernel: tpu_custom_call.1
$region0: #{tpu_custom_call.1}
  #allocation0 [shape = 'u32[]', space=smem, size = 0x4, offset = 0x4, fixed_abs, tag = 'smem constant byte address 0x4 - core index']
  #allocation1 [shape = 'u32[72,128]{1,0:T(1,128)}', space=vmem, size = 0x9000, scoped, tag = 'internal scratch']
  #allocation2 [shape = 's32[1]{0:T(128)S(6)}', space=smem, size = 0x200, scoped, tag = 'scoped memory for tpu_custom_call.1']
  %s0 = inlined_call_operand.<no memory space> [shape: s32[1], index: 0, kind: input, shape index: {}]
  %s1 = inlined_call_operand.hbm [shape: f32[2,1024], index: 1, kind: input, shape index: {}]
  %s2 = inlined_call_operand.hbm [shape: f32[2,1024], index: 2, kind: output, shape index: {}]
  %s3 = sld [smem:[#allocation0]]
  $region22: #{tpu_custom_call.1} parent=0
    _
  %s5 = ssub.s32 1, %s3
  %s6 = scalar_select 0, %s5, %s3
  %7 = sst [smem:[#allocation2]] %s0
  $region1: #{tpu_custom_call.1} parent=0
    #allocation3 [shape = 'u8[8192]{0}', space=vmem, size = 0x2000, scoped, tag = 'input window, operand 1, single buffered']
    #allocation4 [shape = 's32[1]{0}', space=sflag, size = 0x4, scoped, tag = 'scoped memory for tpu_custom_call.1']
    #allocation5 [shape = 's32[1]{0}', space=sflag, size = 0x4, scoped, tag = 'scoped memory for tpu_custom_call.1']
    #allocation6 [shape = 'u8[8192]{0}', space=vmem, size = 0x2000, scoped, tag = 'output window, operand 0, single buffered']
    %8 = vsyncpa [#allocation4], 0
    %9 = vsyncpa [#allocation5], 0
    // Predicated region
    $region2: #{tpu_custom_call.1} parent=1 // pred_check
      _
    $region3: #{tpu_custom_call.1} parent=1 // pred_check_branch
      %11 = sbr.rel (0) target = $region5
    $region4: #{tpu_custom_call.1} parent=1 // pred_region
      _
    $region5: #{tpu_custom_call.1} parent=1 // pred_fallthru
      _
    // Predicated region
    $region6: #{tpu_custom_call.1} parent=1 // pred_check
      _
    $region7: #{tpu_custom_call.1} parent=1 // pred_check_branch
      %13 = sbr.rel (0) target = $region9
    $region8: #{tpu_custom_call.1} parent=1 // pred_region
      %15 = vsyncadd [#allocation4], 0
      %s17 = sshll.u32 %s1, 4
      %s18 = int_to_ptr.hbm [resolvable:$true] %s17
      %s19 = sshll.u32 [#allocation3], 4
      %s20 = int_to_ptr.vmem [resolvable:$true] %s19
      %22 = dma.hbm_to_vmem [thread:$0]  %s18, 256, %s20, [#allocation4]
    $region9: #{tpu_custom_call.1} parent=1 // pred_fallthru
      _
    // Predicated region
    $region10: #{tpu_custom_call.1} parent=1 // pred_check
      _
    $region11: #{tpu_custom_call.1} parent=1 // pred_check_branch
      %24 = sbr.rel (0) target = $region13
    $region12: #{tpu_custom_call.1} parent=1 // pred_region
      %26 = dma.done [#allocation4], 256
    $region13: #{tpu_custom_call.1} parent=1 // pred_fallthru
      _
    %s27 = sld [smem:[#allocation2]]
    %s28 = smul.u32 %s27, 2654435761
    %v29 = vlaneseq
    %v30 = vand.u32 %v29, 127
    %v31 = vadd.s32 %v30, 128
    %v32 = vadd.s32 %v30, 256
    %v33 = vadd.s32 %v30, 384
    %v34 = vadd.s32 %v30, 512
    %v35 = vadd.s32 %v30, 640
    %v36 = vadd.s32 %v30, 768
    %v37 = vadd.s32 %v30, 896
    %s38 = smul.u32 0, 1024
    %v39 = vstv %s38
    %v40 = vadd.s32 %v39, %v30
    %v41 = vadd.s32 %v39, %v31
    %v42 = vadd.s32 %v39, %v32
    %v43 = vadd.s32 %v39, %v33
    %v44 = vadd.s32 %v39, %v34
    %v45 = vadd.s32 %v39, %v35
    %v46 = vadd.s32 %v39, %v36
    %v47 = vadd.s32 %v39, %v37
    %v48 = vlaneseq
    %v49 = vshrl.u32 %v48, 7
    %s50 = smul.u32 0, 2
    %v51 = vstv %s50
    %v52 = vadd.s32 %v51, %v49
    %v53 = vmul.u32 %v52, 1024
    %v54 = vadd.s32 %v53, %v40
    %v55 = vadd.s32 %v53, %v41
    %v56 = vadd.s32 %v53, %v42
    %v57 = vadd.s32 %v53, %v43
    %v58 = vadd.s32 %v53, %v44
    %v59 = vadd.s32 %v53, %v45
    %v60 = vadd.s32 %v53, %v46
    %v61 = vadd.s32 %v53, %v47
    %v62 = vstv %s28
    %v63 = vxor.u32 %v54, %v62
    %v64 = vxor.u32 %v55, %v62
    %v65 = vxor.u32 %v56, %v62
    %v66 = vxor.u32 %v57, %v62
    %v67 = vxor.u32 %v58, %v62
    %v68 = vxor.u32 %v59, %v62
    %v69 = vxor.u32 %v60, %v62
    %v70 = vxor.u32 %v61, %v62
    %v71 = vshrl.u32 %v63, 16
    %v72 = vshrl.u32 %v64, 16
    %v73 = vshrl.u32 %v65, 16
    %v74 = vshrl.u32 %v66, 16
    %v75 = vshrl.u32 %v67, 16
    %v76 = vshrl.u32 %v68, 16
    %v77 = vshrl.u32 %v69, 16
    %v78 = vshrl.u32 %v70, 16
    %v79 = vxor.u32 %v63, %v71
    %v80 = vxor.u32 %v64, %v72
    %v81 = vxor.u32 %v65, %v73
    %v82 = vxor.u32 %v66, %v74
    %v83 = vxor.u32 %v67, %v75
    %v84 = vxor.u32 %v68, %v76
    %v85 = vxor.u32 %v69, %v77
    %v86 = vxor.u32 %v70, %v78
    %v87 = vmul.u32 %v79, 2146121005
    %v88 = vmul.u32 %v80, 2146121005
    %v89 = vmul.u32 %v81, 2146121005
    %v90 = vmul.u32 %v82, 2146121005
    %v91 = vmul.u32 %v83, 2146121005
    %v92 = vmul.u32 %v84, 2146121005
    %v93 = vmul.u32 %v85, 2146121005
    %v94 = vmul.u32 %v86, 2146121005
    %v95 = vshrl.u32 %v87, 15
    %v96 = vshrl.u32 %v88, 15
    %v97 = vshrl.u32 %v89, 15
    %v98 = vshrl.u32 %v90, 15
    %v99 = vshrl.u32 %v91, 15
    %v100 = vshrl.u32 %v92, 15
    %v101 = vshrl.u32 %v93, 15
    %v102 = vshrl.u32 %v94, 15
    %v103 = vxor.u32 %v87, %v95
    %v104 = vxor.u32 %v88, %v96
    %v105 = vxor.u32 %v89, %v97
    %v106 = vxor.u32 %v90, %v98
    %v107 = vxor.u32 %v91, %v99
    %v108 = vxor.u32 %v92, %v100
    %v109 = vxor.u32 %v93, %v101
    %v110 = vxor.u32 %v94, %v102
    %v111 = vmul.u32 %v103, 2221713035
    %v112 = vmul.u32 %v104, 2221713035
    %v113 = vmul.u32 %v105, 2221713035
    %v114 = vmul.u32 %v106, 2221713035
    %v115 = vmul.u32 %v107, 2221713035
    %v116 = vmul.u32 %v108, 2221713035
    %v117 = vmul.u32 %v109, 2221713035
    %v118 = vmul.u32 %v110, 2221713035
    %v119 = vshrl.u32 %v111, 16
    %v120 = vshrl.u32 %v112, 16
    %v121 = vshrl.u32 %v113, 16
    %v122 = vshrl.u32 %v114, 16
    %v123 = vshrl.u32 %v115, 16
    %v124 = vshrl.u32 %v116, 16
    %v125 = vshrl.u32 %v117, 16
    %v126 = vshrl.u32 %v118, 16
    %v127 = vxor.u32 %v111, %v119
    %v128 = vxor.u32 %v112, %v120
    %v129 = vxor.u32 %v113, %v121
    %v130 = vxor.u32 %v114, %v122
    %v131 = vxor.u32 %v115, %v123
    %v132 = vxor.u32 %v116, %v124
    %v133 = vxor.u32 %v117, %v125
    %v134 = vxor.u32 %v118, %v126
    %v135 = vadd.s32 %v127, 2147483648
    %vm137 = vcmp.lt.s32.totalorder %v135, 1503238554
    %v138 = vadd.s32 %v128, 2147483648
    %vm140 = vcmp.lt.s32.totalorder %v138, 1503238554
    %v141 = vadd.s32 %v129, 2147483648
    %vm143 = vcmp.lt.s32.totalorder %v141, 1503238554
    %v144 = vadd.s32 %v130, 2147483648
    %vm146 = vcmp.lt.s32.totalorder %v144, 1503238554
    %v147 = vadd.s32 %v131, 2147483648
    %vm149 = vcmp.lt.s32.totalorder %v147, 1503238554
    %v150 = vadd.s32 %v132, 2147483648
    %vm152 = vcmp.lt.s32.totalorder %v150, 1503238554
    %v153 = vadd.s32 %v133, 2147483648
    %vm155 = vcmp.lt.s32.totalorder %v153, 1503238554
    %v156 = vadd.s32 %v134, 2147483648
    %vm158 = vcmp.lt.s32.totalorder %v156, 1503238554
    %v159 = vld [vmem:[#allocation3] sm:$0xff]
    %v160 = vld [vmem:[#allocation3 + $0x8] sm:$0xff]
    %v161 = vmul.f32 %v159, 1.1764706
    %v162 = vmul.f32 %v160, 1.1764706
    %165 = vst [vmem:[#allocation1] ss:$4 sm:$0xff] %v161
    %s166 = scalar_lea.vmem [#allocation1], 32
    %167 = vst [vmem:[%s166] ss:$4 sm:$0xff] %v162
    %v168 = vld.sshfl [vmem:[#allocation1] sm:$0xff pattern:$0x73625140]
    %v169 = vld.sshfl [vmem:[#allocation1 + $0x8] sm:$0xff pattern:$0x73625140]
    %v170 = vld.sshfl [vmem:[#allocation1 + $0x10] sm:$0xff pattern:$0x73625140]
    %v171 = vld.sshfl [vmem:[#allocation1 + $0x18] sm:$0xff pattern:$0x73625140]
    %v172 = vld.sshfl [vmem:[#allocation1 + $0x20] sm:$0xff pattern:$0x73625140]
    %v173 = vld.sshfl [vmem:[#allocation1 + $0x28] sm:$0xff pattern:$0x73625140]
    %v174 = vld.sshfl [vmem:[#allocation1 + $0x30] sm:$0xff pattern:$0x73625140]
    %v175 = vld.sshfl [vmem:[#allocation1 + $0x38] sm:$0xff pattern:$0x73625140]
    %v184 = vsel %vm137, %v168, 0.0
    %v185 = vsel %vm140, %v169, 0.0
    %v186 = vsel %vm143, %v170, 0.0
    %v187 = vsel %vm146, %v171, 0.0
    %v188 = vsel %vm149, %v172, 0.0
    %v189 = vsel %vm152, %v173, 0.0
    %v190 = vsel %vm155, %v174, 0.0
    %v191 = vsel %vm158, %v175, 0.0
    %v200 = vrot.slane %v185, 6
    %v201 = vrot.slane %v186, 4
    %v202 = vrot.slane %v187, 2
    %v203 = vrot.slane %v189, 6
    %v204 = vrot.slane %v190, 4
    %v205 = vrot.slane %v191, 2
    %vm206 = vcmask 1041408
    %v207 = vsel %vm206, %v184, %v200
    %vm208 = vcmask 1045508
    %v209 = vsel %vm208, %v201, %v202
    %vm210 = vcmask 1043456
    %v211 = vsel %vm210, %v207, %v209
    %v212 = vsel %vm206, %v188, %v203
    %v213 = vsel %vm208, %v204, %v205
    %v214 = vsel %vm210, %v212, %v213
    %217 = vst [vmem:[#allocation6] sm:$0xff] %v211
    %218 = vst [vmem:[#allocation6 + $0x8] sm:$0xff] %v214
    // Predicated region
    $region14: #{tpu_custom_call.1} parent=1 // pred_check
      _
    $region15: #{tpu_custom_call.1} parent=1 // pred_check_branch
      %220 = sbr.rel (0) target = $region17
    $region16: #{tpu_custom_call.1} parent=1 // pred_region
      %222 = vsyncadd [#allocation5], 0
      %s224 = sshll.u32 [#allocation6], 4
      %s225 = int_to_ptr.vmem [resolvable:$true] %s224
      %s226 = sshll.u32 %s2, 4
      %s227 = int_to_ptr.hbm [resolvable:$true] %s226
      %229 = dma.vmem_to_hbm [thread:$0]  %s225, 256, %s227, [#allocation5]
    $region17: #{tpu_custom_call.1} parent=1 // pred_fallthru
      _
    // Predicated region
    $region18: #{tpu_custom_call.1} parent=1 // pred_check
      _
    $region19: #{tpu_custom_call.1} parent=1 // pred_check_branch
      %231 = sbr.rel (0) target = $region21
    $region20: #{tpu_custom_call.1} parent=1 // pred_region
      %233 = dma.done [#allocation5], 256
    $region21: #{tpu_custom_call.1} parent=1 // pred_fallthru
      _
    %234 = vsyncpa [#allocation4], 1
    %235 = vsyncpa [#allocation5], 1

</llo_original>
